<compile_context>
chip_gen: v5e
topology: v5e:2x2
jax: 0.10.0
libtpu: 0.0.40
codegen_flags: <defaults>
</compile_context>

<pallas_src>
import functools

import jax
import jax.numpy as jnp
from jax import lax
from jax.experimental import pallas as pl
from jax.experimental.pallas import tpu as pltpu


# ---------------------------------------------------------------------------
# Kernel A: embedding lookup (one-hot MXU gather) + GRU input projection
# ---------------------------------------------------------------------------
def _embed_proj_kernel(ids_ref, table_ref, wih_ref, bih_ref, out_ref):
    ids = ids_ref[...]                                   # (blk, 1) int32
    rows = ids.shape[0]
    vocab = table_ref.shape[0]

    # One-hot gather on the MXU (fine for modest vocabularies; a scalar-prefetch
    # DMA row-gather would replace this for a large production vocab).
    col = lax.broadcasted_iota(jnp.int32, (rows, vocab), 1)
    onehot = (col == ids).astype(jnp.float32)            # (blk, V)
    emb = jnp.dot(onehot, table_ref[...],
                  preferred_element_type=jnp.float32)    # (blk, word_dim)

    # TODO(synk): nn.Dropout(0.1) is identity in eval mode; a training-mode
    # kernel would draw a keep-mask here with pltpu.prng_seed/stateful_bernoulli.

    dn = (((1,), (1,)), ((), ()))                        # emb @ W_ih.T, contracted
    out_ref[...] = lax.dot_general(
        emb, wih_ref[...], dn,
        preferred_element_type=jnp.float32) + bih_ref[...]   # (blk, 3H)


def _embed_proj(ids_flat, table, w_ih, b_ih2d, *, block_rows=256):
    bt = ids_flat.shape[0]
    v, dw = table.shape
    h3 = w_ih.shape[0]
    blk = bt if bt <= block_rows else block_rows
    return pl.pallas_call(
        _embed_proj_kernel,
        out_shape=jax.ShapeDtypeStruct((bt, h3), jnp.float32),
        grid=(pl.cdiv(bt, blk),),
        in_specs=[
            pl.BlockSpec((blk, 1), lambda i: (i, 0)),    # token ids
            pl.BlockSpec((v, dw), lambda i: (0, 0)),     # embedding table
            pl.BlockSpec((h3, dw), lambda i: (0, 0)),    # W_ih  (3H, word_dim)
            pl.BlockSpec((1, h3), lambda i: (0, 0)),     # b_ih
        ],
        out_specs=pl.BlockSpec((blk, h3), lambda i: (i, 0)),
        compiler_params=pltpu.CompilerParams(
            dimension_semantics=("parallel",)),
    )(ids_flat, table, w_ih, b_ih2d)


# ---------------------------------------------------------------------------
# Kernel B: sequential GRU + l2norm + length masking + mean pooling
# ---------------------------------------------------------------------------
def _gru_step_kernel(xp_ref, whh_ref, bhh_ref, len_ref, inv_ref,
                     emb_ref, mean_ref, h_ref, acc_ref, *, eps):
    t = pl.program_id(0)

    @pl.when(t == 0)
    def _init():
        h_ref[...] = jnp.zeros_like(h_ref)
        acc_ref[...] = jnp.zeros_like(acc_ref)

    h = h_ref[...]                                       # (B, H)

    # h @ W.T via contracted dot_general -- no explicit transpose feeds the MXU.
    dn = (((1,), (1,)), ((), ()))
    hr = lax.dot_general(h, whh_ref[0], dn,
                         preferred_element_type=jnp.float32) + bhh_ref[0]
    hz = lax.dot_general(h, whh_ref[1], dn,
                         preferred_element_type=jnp.float32) + bhh_ref[1]
    hn = lax.dot_general(h, whh_ref[2], dn,
                         preferred_element_type=jnp.float32) + bhh_ref[2]

    xr = xp_ref[0, 0]                                    # (B, H), includes b_ih
    xz = xp_ref[0, 1]
    xn = xp_ref[0, 2]

    r = 1.0 / (1.0 + jnp.exp(-(xr + hr)))
    z = 1.0 / (1.0 + jnp.exp(-(xz + hz)))
    n = jnp.tanh(xn + r * hn)
    h_new = (1.0 - z) * n + z * h
    h_ref[...] = h_new

    # l2norm of each token embedding; zero rows past the sequence length
    # (this is exactly what pad_packed_sequence(batch_first=True) yields).
    inv_norm = 1.0 / (jnp.sqrt(jnp.sum(h_new * h_new, axis=-1, keepdims=True)) + eps)
    valid = (len_ref[...] > t).astype(jnp.float32)       # (B, 1)
    y = h_new * inv_norm * valid

    emb_ref[0] = y
    acc_ref[...] = acc_ref[...] + y

    @pl.when(t == pl.num_programs(0) - 1)
    def _finalize():
        m = acc_ref[...] * inv_ref[0, 0]                 # mean over max(lengths)
        m_inv = 1.0 / (jnp.sqrt(jnp.sum(m * m, axis=-1, keepdims=True)) + eps)
        mean_ref[...] = m * m_inv


def _gru_sequence(x_proj_t3bh, w_hh_g, b_hh_g, lens2d, inv_maxlen, *, eps):
    t, _, b, h = x_proj_t3bh.shape
    return pl.pallas_call(
        functools.partial(_gru_step_kernel, eps=eps),
        out_shape=(jax.ShapeDtypeStruct((t, b, h), jnp.float32),   # cap_emb (T,B,H)
                   jax.ShapeDtypeStruct((b, h), jnp.float32)),     # cap_emb_mean
        grid=(t,),
        in_specs=[
            pl.BlockSpec((1, 3, b, h), lambda i: (i, 0, 0, 0)),    # x_proj[t]
            pl.BlockSpec((3, h, h), lambda i: (0, 0, 0)),          # W_hh per gate
            pl.BlockSpec((3, 1, h), lambda i: (0, 0, 0)),          # b_hh per gate
            pl.BlockSpec((b, 1), lambda i: (0, 0)),                # lengths
            pl.BlockSpec(memory_space=pltpu.MemorySpace.SMEM),     # 1/max_len scalar
        ],
        out_specs=(
            pl.BlockSpec((1, b, h), lambda i: (i, 0, 0)),
            pl.BlockSpec((b, h), lambda i: (0, 0)),
        ),
        scratch_shapes=[pltpu.VMEM((b, h), jnp.float32),           # hidden state
                        pltpu.VMEM((b, h), jnp.float32)],          # mean accumulator
        compiler_params=pltpu.CompilerParams(
            dimension_semantics=("arbitrary",)),                   # true recurrence
    )(x_proj_t3bh, w_hh_g, b_hh_g, lens2d, inv_maxlen)


# ---------------------------------------------------------------------------
# Wrapper mirroring EncoderWord.forward (single-layer GRU, eval mode)
# ---------------------------------------------------------------------------
def encoder_word_forward(ids, lengths, embed_weight, w_ih, b_ih, w_hh, b_hh,
                         *, eps=1e-8):
    # TODO(synk): opt.num_layers > 1 would stack this (re-project the previous
    # layer's outputs and re-run the recurrence kernel per layer).
    b, t = ids.shape
    h = w_hh.shape[1]

    ids_flat = ids.reshape(b * t, 1).astype(jnp.int32)
    x_proj = _embed_proj(ids_flat,
                         embed_weight.astype(jnp.float32),
                         w_ih.astype(jnp.float32),
                         b_ih.reshape(1, 3 * h).astype(jnp.float32))   # (B*T, 3H)

    # layout plumbing only: gate-major, time on the sequential grid axis.
    x_proj = jnp.transpose(x_proj.reshape(b, t, 3, h), (1, 2, 0, 3))   # (T,3,B,H)

    w_hh_g = w_hh.reshape(3, h, h).astype(jnp.float32)
    b_hh_g = b_hh.reshape(3, 1, h).astype(jnp.float32)
    lens2d = lengths.reshape(b, 1).astype(jnp.int32)
    inv_maxlen = (1.0 / jnp.maximum(jnp.max(lengths), 1)
                  .astype(jnp.float32)).reshape(1, 1)

    cap_emb_tbh, cap_emb_mean = _gru_sequence(
        x_proj, w_hh_g, b_hh_g, lens2d, inv_maxlen, eps=eps)

    cap_emb = jnp.transpose(cap_emb_tbh, (1, 0, 2))                    # (B, T, H)
    return cap_emb, cap_emb_mean


# ---------------------------------------------------------------------------
# Pure-JAX reference (PyTorch semantics) for verification
# ---------------------------------------------------------------------------
def _reference_forward(ids, lengths, table, w_ih, b_ih, w_hh, b_hh, eps=1e-8):
    prec = jax.lax.Precision.HIGHEST
    b, t = ids.shape
    h_dim = w_hh.shape[1]
    x = jnp.take(table, ids, axis=0)                     # (B, T, Dw)
    h = jnp.zeros((b, h_dim), jnp.float32)
    outs = []
    for step in range(t):
        gi = jnp.dot(x[:, step], w_ih.T, precision=prec) + b_ih
        gh = jnp.dot(h, w_hh.T, precision=prec) + b_hh
        r = jax.nn.sigmoid(gi[:, :h_dim] + gh[:, :h_dim])
        z = jax.nn.sigmoid(gi[:, h_dim:2 * h_dim] + gh[:, h_dim:2 * h_dim])
        n = jnp.tanh(gi[:, 2 * h_dim:] + r * gh[:, 2 * h_dim:])
        h = (1.0 - z) * n + z * h
        outs.append(h)
    out = jnp.stack(outs, axis=1)                        # (B, T, H)
    mask = (jnp.arange(t)[None, :] < lengths[:, None]).astype(jnp.float32)
    out = out * mask[:, :, None]
    out = out / (jnp.sqrt(jnp.sum(out * out, -1, keepdims=True)) + eps)
    max_len = jnp.maximum(jnp.max(lengths), 1).astype(jnp.float32)
    mean = jnp.sum(out, axis=1) / max_len
    mean = mean / (jnp.sqrt(jnp.sum(mean * mean, -1, keepdims=True)) + eps)
    return out, mean


if __name__ == "__main__":
    V, DW, H = 100, 32, 32          # vocab_size, word_dim, embed_size
    B, T = 4, 8                     # batch, max sequence length

    key = jax.random.PRNGKey(0)
    ks = jax.random.split(key, 6)
    table = 0.1 * jax.random.normal(ks[0], (V, DW), jnp.float32)
    w_ih = 0.1 * jax.random.normal(ks[1], (3 * H, DW), jnp.float32)
    b_ih = 0.1 * jax.random.normal(ks[2], (3 * H,), jnp.float32)
    w_hh = 0.1 * jax.random.normal(ks[3], (3 * H, H), jnp.float32)
    b_hh = 0.1 * jax.random.normal(ks[4], (3 * H,), jnp.float32)
    ids = jax.random.randint(ks[5], (B, T), 0, V, dtype=jnp.int32)
    lengths = jnp.array([8, 6, 5, 3], jnp.int32)

    cap_emb, cap_mean = encoder_word_forward(ids, lengths, table,
                                             w_ih, b_ih, w_hh, b_hh)
    cap_emb, cap_mean = jax.block_until_ready((cap_emb, cap_mean))

    ref_emb, ref_mean = _reference_forward(ids, lengths, table,
                                           w_ih, b_ih, w_hh, b_hh)
    err_emb = float(jnp.max(jnp.abs(cap_emb - ref_emb)))
    err_mean = float(jnp.max(jnp.abs(cap_mean - ref_mean)))
    assert err_emb < 5e-3 and err_mean < 5e-3, (err_emb, err_mean)

    print("KERNEL_OK")
</pallas_src>

<mosaic_0001>
module attributes {stable_mosaic.version = 11 : i64} {
  func.func @_embed_proj_kernel(%arg0: i32, %arg1: memref<32x1xi32, #tpu.memory_space<vmem>>, %arg2: memref<100x32xf32, #tpu.memory_space<vmem>>, %arg3: memref<96x32xf32, #tpu.memory_space<vmem>>, %arg4: memref<1x96xf32, #tpu.memory_space<vmem>>, %arg5: memref<32x96xf32, #tpu.memory_space<vmem>>) attributes {dimension_semantics = [#tpu.dimension_semantics<parallel>], iteration_bounds = array<i64: 1>, scalar_prefetch = 0 : i64, scratch_operands = 0 : i64, tpu.core_type = #tpu.core_type<tc>, window_params = [{transform_indices = @transform_0, window_bounds = array<i64: 32, 1>}, {pipeline_mode = #tpu.pipeline_mode<synchronous>, transform_indices = @transform_1, window_bounds = array<i64: 100, 32>}, {pipeline_mode = #tpu.pipeline_mode<synchronous>, transform_indices = @transform_2, window_bounds = array<i64: 96, 32>}, {pipeline_mode = #tpu.pipeline_mode<synchronous>, transform_indices = @transform_3, window_bounds = array<i64: 1, 96>}, {transform_indices = @transform_4, window_bounds = array<i64: 32, 96>}]} {
    %c0 = arith.constant 0 : index
    %c0_0 = arith.constant 0 : index
    %0 = vector.load %arg1[%c0, %c0_0] : memref<32x1xi32, #tpu.memory_space<vmem>>, vector<32x1xi32>
    %1 = tpu.iota {dimensions = array<i32: 1>} : vector<32x100xi32>
    %2 = vector.broadcast %0 : vector<32x1xi32> to vector<32x100xi32>
    %3 = arith.cmpi eq, %1, %2 : vector<32x100xi32>
    %4 = arith.extui %3 : vector<32x100xi1> to vector<32x100xi32>
    %5 = arith.sitofp %4 : vector<32x100xi32> to vector<32x100xf32>
    %c0_1 = arith.constant 0 : index
    %c0_2 = arith.constant 0 : index
    %6 = vector.load %arg2[%c0_1, %c0_2] : memref<100x32xf32, #tpu.memory_space<vmem>>, vector<100x32xf32>
    %cst = arith.constant dense<0.000000e+00> : vector<32x32xf32>
    %7 = tpu.matmul %5, %6, %cst {dimension_numbers = #tpu.dot_dimension_numbers<[1], [0], [0], [1], [0, 0, 1, 1], [], []>} : vector<32x100xf32>, vector<100x32xf32>, vector<32x32xf32> -> vector<32x32xf32>
    %c0_3 = arith.constant 0 : index
    %c0_4 = arith.constant 0 : index
    %8 = vector.load %arg3[%c0_3, %c0_4] : memref<96x32xf32, #tpu.memory_space<vmem>>, vector<96x32xf32>
    %cst_5 = arith.constant dense<0.000000e+00> : vector<32x96xf32>
    %9 = tpu.matmul %7, %8, %cst_5 {dimension_numbers = #tpu.dot_dimension_numbers<[1], [1], [0], [0], [0, 0, 1, 0], [], []>} : vector<32x32xf32>, vector<96x32xf32>, vector<32x96xf32> -> vector<32x96xf32>
    %c0_6 = arith.constant 0 : index
    %c0_7 = arith.constant 0 : index
    %10 = vector.load %arg4[%c0_6, %c0_7] : memref<1x96xf32, #tpu.memory_space<vmem>>, vector<1x96xf32>
    %11 = vector.broadcast %10 : vector<1x96xf32> to vector<32x96xf32>
    %12 = arith.addf %9, %11 : vector<32x96xf32>
    %c0_8 = arith.constant 0 : index
    %c0_9 = arith.constant 0 : index
    %13 = vector.load %arg5[%c0_8, %c0_9] : memref<32x96xf32, #tpu.memory_space<vmem>>, vector<32x96xf32>
    tpu.vector_store %arg5[%c0_8, %c0_9], %12 {strides = array<i32>} : memref<32x96xf32, #tpu.memory_space<vmem>>, vector<32x96xf32>,
    return
  }
  func.func @transform_0(%arg0: i32) -> (i32, i32) {
    %c0_i32 = arith.constant 0 : i32
    %c0_i32_0 = arith.constant 0 : i32
    return %arg0, %c0_i32 : i32, i32
  }
  func.func @transform_1(%arg0: i32) -> (i32, i32) {
    %c0_i32 = arith.constant 0 : i32
    %c0_i32_0 = arith.constant 0 : i32
    %c0_i32_1 = arith.constant 0 : i32
    return %c0_i32, %c0_i32_0 : i32, i32
  }
  func.func @transform_2(%arg0: i32) -> (i32, i32) {
    %c0_i32 = arith.constant 0 : i32
    %c0_i32_0 = arith.constant 0 : i32
    %c0_i32_1 = arith.constant 0 : i32
    return %c0_i32, %c0_i32_0 : i32, i32
  }
  func.func @transform_3(%arg0: i32) -> (i32, i32) {
    %c0_i32 = arith.constant 0 : i32
    %c0_i32_0 = arith.constant 0 : i32
    %c0_i32_1 = arith.constant 0 : i32
    return %c0_i32, %c0_i32_0 : i32, i32
  }
  func.func @transform_4(%arg0: i32) -> (i32, i32) {
    %c0_i32 = arith.constant 0 : i32
    %c0_i32_0 = arith.constant 0 : i32
    return %arg0, %c0_i32 : i32, i32
  }
}

</mosaic_0001>

<llo_original>
// kernel: tpu_custom_call.1
$region0: #{tpu_custom_call.1}
  #allocation0 [shape = 'u32[]', space=smem, size = 0x4, offset = 0x4, fixed_abs, tag = 'smem constant byte address 0x4 - core index']
  #allocation1 [shape = 'u32[72,128]{1,0:T(1,128)}', space=vmem, size = 0x9000, scoped, tag = 'internal scratch']
  %s0 = inlined_call_operand.vmem [shape: s32[32,1], index: 0, kind: input, shape index: {}]
  %s1 = inlined_call_operand.vmem [shape: f32[100,32], index: 1, kind: input, shape index: {}]
  %s2 = inlined_call_operand.vmem [shape: f32[96,32], index: 2, kind: input, shape index: {}]
  %s3 = inlined_call_operand.vmem [shape: f32[1,96], index: 3, kind: input, shape index: {}]
  %s4 = inlined_call_operand.hbm [shape: f32[32,96], index: 4, kind: output, shape index: {}]
  %s5 = sld [smem:[#allocation0]]
  $region26: #{tpu_custom_call.1} parent=0
    _
  %s7 = ssub.s32 1, %s5
  %s8 = scalar_select 0, %s7, %s5
  $region1: #{tpu_custom_call.1} parent=0
    #allocation2 [shape = 'u8[16384]{0}', space=vmem, size = 0x4000, scoped, tag = 'output window, operand 0, single buffered']
    #allocation3 [shape = 's32[1]{0}', space=sflag, size = 0x4, scoped, tag = 'scoped memory for tpu_custom_call.1']
    %9 = vsyncpa [#allocation3], 0
    // Predicated region
    $region2: #{tpu_custom_call.1} parent=1 // pred_check
      _
    $region3: #{tpu_custom_call.1} parent=1 // pred_check_branch
      %11 = sbr.rel (0) target = $region5
    $region4: #{tpu_custom_call.1} parent=1 // pred_region
      _
    $region5: #{tpu_custom_call.1} parent=1 // pred_fallthru
      _
    // Predicated region
    $region6: #{tpu_custom_call.1} parent=1 // pred_check
      _
    $region7: #{tpu_custom_call.1} parent=1 // pred_check_branch
      %13 = sbr.rel (0) target = $region9
    $region8: #{tpu_custom_call.1} parent=1 // pred_region
      _
    $region9: #{tpu_custom_call.1} parent=1 // pred_fallthru
      _
    // Predicated region
    $region10: #{tpu_custom_call.1} parent=1 // pred_check
      _
    $region11: #{tpu_custom_call.1} parent=1 // pred_check_branch
      %15 = sbr.rel (0) target = $region13
    $region12: #{tpu_custom_call.1} parent=1 // pred_region
      _
    $region13: #{tpu_custom_call.1} parent=1 // pred_fallthru
      _
    // Predicated region
    $region14: #{tpu_custom_call.1} parent=1 // pred_check
      _
    $region15: #{tpu_custom_call.1} parent=1 // pred_check_branch
      %17 = sbr.rel (0) target = $region17
    $region16: #{tpu_custom_call.1} parent=1 // pred_region
      _
    $region17: #{tpu_custom_call.1} parent=1 // pred_fallthru
      _
    %v18 = vld [vmem:[%s0] sm:$0xff]
    %v19 = vld [vmem:[%s0 + $0x8] sm:$0xff]
    %v20 = vld [vmem:[%s0 + $0x10] sm:$0xff]
    %v21 = vld [vmem:[%s0 + $0x18] sm:$0xff]
    %v22 = vlaneseq
    %v23 = vand.u32 %v22, 127
    %24 = vset.pattern.permute.xlu0 0
    %25 = vperm.xlu0 %24, %v18
    %v26 = vpop.permute.xlu0 %25
    %27 = vset.pattern.permute.xlu0 0
    %28 = vperm.xlu0 %27, %v19
    %v29 = vpop.permute.xlu0 %28
    %30 = vset.pattern.permute.xlu0 0
    %31 = vperm.xlu0 %30, %v20
    %v32 = vpop.permute.xlu0 %31
    %33 = vset.pattern.permute.xlu0 0
    %34 = vperm.xlu0 %33, %v21
    %v35 = vpop.permute.xlu0 %34
    %vm36 = vcmp.eq.s32.totalorder %v23, %v26
    %vm37 = vcmp.eq.s32.totalorder %v23, %v29
    %vm38 = vcmp.eq.s32.totalorder %v23, %v32
    %vm39 = vcmp.eq.s32.totalorder %v23, %v35
    %v40 = vsel %vm36, 1, 0
    %v41 = vsel %vm37, 1, 0
    %v42 = vsel %vm38, 1, 0
    %v43 = vsel %vm39, 1, 0
    %v44 = vcvt.s32.f32 %v40
    %v45 = vcvt.s32.f32 %v41
    %v46 = vcvt.s32.f32 %v42
    %v47 = vcvt.s32.f32 %v43
    %v48 = vld [vmem:[%s1] sm:$0xff]
    %v49 = vld [vmem:[%s1 + $0x8] sm:$0xff]
    %v50 = vld [vmem:[%s1 + $0x10] sm:$0xff]
    %v51 = vld [vmem:[%s1 + $0x18] sm:$0xff]
    %v52 = vld [vmem:[%s1 + $0x20] sm:$0xff]
    %v53 = vld [vmem:[%s1 + $0x28] sm:$0xff]
    %v54 = vld [vmem:[%s1 + $0x30] sm:$0xff]
    %v55 = vld [vmem:[%s1 + $0x38] sm:$0xff]
    %v56 = vld [vmem:[%s1 + $0x40] sm:$0xff]
    %v57 = vld [vmem:[%s1 + $0x48] sm:$0xff]
    %v58 = vld [vmem:[%s1 + $0x50] sm:$0xff]
    %v59 = vld [vmem:[%s1 + $0x58] sm:$0xff]
    %v60 = vld [vmem:[%s1 + $0x60] sm:$0xf]
    %vm61 = vcmask 818176
    %v63 = vsel %vm61, %v44, 0
    %v66 = vsel %vm61, %v45, 0
    %v69 = vsel %vm61, %v46, 0
    %v72 = vsel %vm61, %v47, 0
    %vm74 = vcmask 1043456
    %v76 = vsel %vm74, %v60, 0
    %78 = vmatpush.msra.mxu0 0.0
    %79 = vmatpush.msra.mxu0 0.0
    %80 = vmatpush.msra.mxu0 0.0
    %81 = vmatpush.msra.mxu0 %v76
    %82 = vmatpush.msra.mxu0 %v59
    %83 = vmatpush.msra.mxu0 %v58
    %84 = vmatpush.msra.mxu0 %v57
    %85 = vmatpush.msra.mxu0 %v56
    %86 = vmatpush.msra.mxu0 %v55
    %87 = vmatpush.msra.mxu0 %v54
    %88 = vmatpush.msra.mxu0 %v53
    %89 = vmatpush.msra.mxu0 %v52
    %90 = vmatpush.msra.mxu0 %v51
    %91 = vmatpush.msra.mxu0 %v50
    %92 = vmatpush.msra.mxu0 %v49
    %93 = vmatpush.msra.mxu0 %v48
    %94 = vmatmul.f32.gmra.mxu0 %v63
    %v95 = vpop.f32.mrf.mxu0
    %v96 = vadd.f32 0.0, %v95
    %97 = vmatmul.f32.gmra.mxu0 %v66
    %v98 = vpop.f32.mrf.mxu0
    %v99 = vadd.f32 0.0, %v98
    %100 = vmatmul.f32.gmra.mxu0 %v69
    %v101 = vpop.f32.mrf.mxu0
    %v102 = vadd.f32 0.0, %v101
    %103 = vmatmul.f32.gmra.mxu0 %v72
    %v104 = vpop.f32.mrf.mxu0
    %v105 = vadd.f32 0.0, %v104
    %106 = vdwg.mxu0
    %v107 = vld [vmem:[%s2] sm:$0xff]
    %v108 = vld [vmem:[%s2 + $0x8] sm:$0xff]
    %v109 = vld [vmem:[%s2 + $0x10] sm:$0xff]
    %v110 = vld [vmem:[%s2 + $0x18] sm:$0xff]
    %v111 = vld [vmem:[%s2 + $0x20] sm:$0xff]
    %v112 = vld [vmem:[%s2 + $0x28] sm:$0xff]
    %v113 = vld [vmem:[%s2 + $0x30] sm:$0xff]
    %v114 = vld [vmem:[%s2 + $0x38] sm:$0xff]
    %v115 = vld [vmem:[%s2 + $0x40] sm:$0xff]
    %v116 = vld [vmem:[%s2 + $0x48] sm:$0xff]
    %v117 = vld [vmem:[%s2 + $0x50] sm:$0xff]
    %v118 = vld [vmem:[%s2 + $0x58] sm:$0xff]
    %v119 = vld [vmem:[%s3] sm:$0x1]
    %v121 = vperm.slane %v119, 0
    %vm123 = vcmask 261120
    %v125 = vsel %vm123, %v96, 0
    %v128 = vsel %vm123, %v99, 0
    %v131 = vsel %vm123, %v102, 0
    %v134 = vsel %vm123, %v105, 0
    %v137 = vsel %vm123, %v107, 0
    %v140 = vsel %vm123, %v108, 0
    %v143 = vsel %vm123, %v109, 0
    %v146 = vsel %vm123, %v110, 0
    %v149 = vsel %vm123, %v111, 0
    %v152 = vsel %vm123, %v112, 0
    %v155 = vsel %vm123, %v113, 0
    %v158 = vsel %vm123, %v114, 0
    %v161 = vsel %vm123, %v115, 0
    %v164 = vsel %vm123, %v116, 0
    %v167 = vsel %vm123, %v117, 0
    %v170 = vsel %vm123, %v118, 0
    %172 = vmatpush.xpose.msra.mxu0 0.0
    %173 = vmatpush.xpose.msra.mxu0 0.0
    %174 = vmatpush.xpose.msra.mxu0 0.0
    %175 = vmatpush.xpose.msra.mxu0 0.0
    %176 = vmatpush.xpose.msra.mxu0 %v170
    %177 = vmatpush.xpose.msra.mxu0 %v167
    %178 = vmatpush.xpose.msra.mxu0 %v164
    %179 = vmatpush.xpose.msra.mxu0 %v161
    %180 = vmatpush.xpose.msra.mxu0 %v158
    %181 = vmatpush.xpose.msra.mxu0 %v155
    %182 = vmatpush.xpose.msra.mxu0 %v152
    %183 = vmatpush.xpose.msra.mxu0 %v149
    %184 = vmatpush.xpose.msra.mxu0 %v146
    %185 = vmatpush.xpose.msra.mxu0 %v143
    %186 = vmatpush.xpose.msra.mxu0 %v140
    %187 = vmatpush.xpose.msra.mxu0 %v137
    %188 = vmatmul.f32.gmra.mxu0 %v125
    %v189 = vpop.f32.mrf.mxu0
    %v190 = vadd.f32 %v121, %v189
    %191 = vmatmul.f32.gmra.mxu0 %v128
    %v192 = vpop.f32.mrf.mxu0
    %v193 = vadd.f32 %v121, %v192
    %194 = vmatmul.f32.gmra.mxu0 %v131
    %v195 = vpop.f32.mrf.mxu0
    %v196 = vadd.f32 %v121, %v195
    %197 = vmatmul.f32.gmra.mxu0 %v134
    %v198 = vpop.f32.mrf.mxu0
    %v199 = vadd.f32 %v121, %v198
    %200 = vdwg.mxu0
    %vm201 = vcmask 785408
    %202 = vst.msk [vmem:[#allocation2] sm:$0xff] %vm201, %v190
    %203 = vst.msk [vmem:[#allocation2 + $0x8] sm:$0xff] %vm201, %v193
    %204 = vst.msk [vmem:[#allocation2 + $0x10] sm:$0xff] %vm201, %v196
    %205 = vst.msk [vmem:[#allocation2 + $0x18] sm:$0xff] %vm201, %v199
    // Predicated region
    $region18: #{tpu_custom_call.1} parent=1 // pred_check
      _
    $region19: #{tpu_custom_call.1} parent=1 // pred_check_branch
      %207 = sbr.rel (0) target = $region21
    $region20: #{tpu_custom_call.1} parent=1 // pred_region
      %209 = vsyncadd [#allocation3], 0
      %s210 = sshll.u32 [#allocation2], 4
      %s211 = int_to_ptr.vmem [resolvable:$true] %s210
      %s212 = sshll.u32 %s4, 4
      %s213 = int_to_ptr.hbm [resolvable:$true] %s212
      %218 = dma.vmem_to_hbm [thread:$0]  %s211, 512, %s213, [#allocation3], 128, 128, 8
    $region21: #{tpu_custom_call.1} parent=1 // pred_fallthru
      _
    // Predicated region
    $region22: #{tpu_custom_call.1} parent=1 // pred_check
      _
    $region23: #{tpu_custom_call.1} parent=1 // pred_check_branch
      %220 = sbr.rel (0) target = $region25
    $region24: #{tpu_custom_call.1} parent=1 // pred_region
      %222 = dma.done [#allocation3], 512
    $region25: #{tpu_custom_call.1} parent=1 // pred_fallthru
      _
    %223 = vsyncpa [#allocation3], 1

</llo_original>
